<compile_context>
chip_gen: v7x
topology: tpu7x:2x2x1
jax: 0.10.0
libtpu: 0.0.40
codegen_flags: <defaults>
</compile_context>

<pallas_src>
from functools import partial
from itertools import permutations

import numpy as np
import jax
import jax.numpy as jnp
from jax.experimental import pallas as pl
from jax.experimental.pallas import tpu as pltpu


def _round_up(x: int, m: int) -> int:
    return ((x + m - 1) // m) * m


def _rmspe_kernel(pt_ref, rt_ref, sel_ref, out_ref, *, inv_n: float):
    # pt_ref : (TB, 2N)      f32   [pred | tgt] rows for this batch tile (pipelined)
    # rt_ref : (2N, N*N)     f32   constant expansion matrix (resident)
    # sel_ref: (N*N, P_pad)  f32   constant one-hot permutation selector (resident)
    # out_ref: (1, 1)        f32   scalar loss (resident accumulator)
    pi = jnp.float32(np.pi)
    half_pi = jnp.float32(np.pi / 2.0)
    inv_pi = jnp.float32(1.0 / np.pi)

    @pl.when(pl.program_id(0) == 0)
    def _init():
        out_ref[...] = jnp.zeros_like(out_ref)

    # Pairwise differences on the MXU: err[b, i*N + j] = pred[b, i] - tgt[b, j]
    err = jnp.dot(pt_ref[...], rt_ref[...], preferred_element_type=jnp.float32)

    # pi-periodic wrap to [-pi/2, pi/2) without a per-element divide:
    # x mod pi = x - pi * floor(x * (1/pi))
    shifted = err + half_pi
    shifted = shifted - pi * jnp.floor(shifted * inv_pi)
    wrapped = shifted - half_pi
    d = wrapped * wrapped                                       # (TB, N*N)

    # Permutation expansion on the MXU: sq_sum[b, p] = sum_j d[b, perm_p[j]*N + j]
    sq_sum = jnp.dot(d, sel_ref[...], preferred_element_type=jnp.float32)  # (TB, P_pad)

    # min over permutations (XLU lane reduce) BEFORE sqrt (sqrt is monotone).
    min_sq = jnp.min(sq_sum, axis=-1, keepdims=True)            # (TB, 1)
    per_sample = jnp.sqrt(min_sq * jnp.float32(inv_n))          # (TB, 1)   TB sqrts (EUP)

    out_ref[...] += jnp.sum(per_sample, axis=0, keepdims=True)  # (1, 1)


def rmspe_loss(doa_predictions: jax.Array, doa: jax.Array, *, batch_tile: int = 512) -> jax.Array:
    """RMSPE loss. doa_predictions, doa: (B, N) float32 radians. Returns scalar."""
    preds = doa_predictions.astype(jnp.float32)
    tgts = doa.astype(jnp.float32)
    B, N = preds.shape
    NN = N * N

    # --- constant matrices (host-side numpy, tiny) -------------------------
    perms = list(permutations(range(N)))
    P = len(perms)
    # Lane-dense permutation axis; multiple of 256 matches v6e/v7x MXU native
    # tile and is also a multiple of 128 for v5e.
    P_pad = _round_up(P, 256)

    # sel[i*N + j, p] = 1  iff  permutation p maps target slot j to prediction i
    sel_np = np.zeros((NN, P_pad), np.float32)
    for p, perm in enumerate(perms):
        for j, i in enumerate(perm):
            sel_np[i * N + j, p] = 1.0
    # Padded columns replicate permutation 0 so they can never win the min.
    sel_np[:, P:] = sel_np[:, :1]
    sel = jnp.asarray(sel_np)

    # rt so that [pred | tgt] @ rt gives pred[b, i] - tgt[b, j] at column i*N + j
    rt_np = np.zeros((2 * N, NN), np.float32)
    for i in range(N):
        for j in range(N):
            rt_np[i, i * N + j] = 1.0
            rt_np[N + j, i * N + j] = -1.0
    rt = jnp.asarray(rt_np)

    # --- batch tiling -------------------------------------------------------
    # Tile must be a multiple of 8 (sublanes). Cap it so the largest in-kernel
    # intermediate (TB, P_pad) f32 stays <= ~2 MiB (bounded vreg/VMEM pressure
    # for any N up to 7), while staying large enough to amortize the ~0.35us
    # per-grid-step overhead. Zero-padded batch rows produce a wrapped error of
    # exactly 0 and therefore contribute 0 to the summed loss.
    tb_cap = max(8, ((2 << 20) // (P_pad * 4)) // 8 * 8)
    TB = _round_up(min(batch_tile, tb_cap, _round_up(B, 8)), 8)
    B_pad = _round_up(B, TB)
    num_tiles = B_pad // TB

    pt = jnp.concatenate([preds, tgts], axis=1)                 # (B, 2N)
    if B_pad != B:
        pt = jnp.pad(pt, ((0, B_pad - B), (0, 0)))

    kernel = partial(_rmspe_kernel, inv_n=1.0 / N)
    out = pl.pallas_call(
        kernel,
        out_shape=jax.ShapeDtypeStruct((1, 1), jnp.float32),
        grid_spec=pltpu.PrefetchScalarGridSpec(
            num_scalar_prefetch=0,
            grid=(num_tiles,),
            in_specs=[
                pl.BlockSpec((TB, 2 * N), lambda i: (i, 0)),     # batch tile (pipelined)
                pl.BlockSpec((2 * N, NN), lambda i: (0, 0)),     # resident constant
                pl.BlockSpec((NN, P_pad), lambda i: (0, 0)),     # resident constant
            ],
            out_specs=pl.BlockSpec((1, 1), lambda i: (0, 0)),    # resident accumulator
        ),
        compiler_params=pltpu.CompilerParams(
            # Reduction into a resident output => the batch axis is "arbitrary".
            dimension_semantics=("arbitrary",),
            # Explicit VMEM budget with headroom (fits v5e/v6e/v7x); actual
            # working set is a few MiB at N <= 7.
            vmem_limit_bytes=32 * 1024 * 1024,
        ),
    )(pt, rt, sel)
    return out[0, 0]


def _rmspe_reference(preds: np.ndarray, targets: np.ndarray) -> float:
    """Pure-numpy reference mirroring the PyTorch forward."""
    B, N = preds.shape
    total = 0.0
    for b in range(B):
        vals = []
        for p in permutations(range(N), N):
            err = preds[b, list(p)] - targets[b]
            err = np.mod(err + np.pi / 2, np.pi) - np.pi / 2
            vals.append(np.linalg.norm(err) / np.sqrt(N))
        total += min(vals)
    return float(total)


if __name__ == "__main__":
    key = jax.random.PRNGKey(0)
    k1, k2, k3, k4, k5, k6 = jax.random.split(key, 6)

    # Case 1: small batch, N = 3 (P = 6 permutations), single grid step.
    B, N = 2, 3
    doa_predictions = jax.random.uniform(
        k1, (B, N), jnp.float32, minval=-np.pi / 2, maxval=np.pi / 2)
    doa = jax.random.uniform(
        k2, (B, N), jnp.float32, minval=-np.pi / 2, maxval=np.pi / 2)
    loss = jax.block_until_ready(rmspe_loss(doa_predictions, doa))
    ref = _rmspe_reference(np.asarray(doa_predictions), np.asarray(doa))
    assert np.allclose(float(loss), ref, rtol=1e-4, atol=1e-4), (float(loss), ref)

    # Case 2: batch padding + multiple grid steps (accumulator path), N = 4.
    B2, N2 = 20, 4
    preds2 = jax.random.uniform(
        k3, (B2, N2), jnp.float32, minval=-np.pi / 2, maxval=np.pi / 2)
    doa2 = jax.random.uniform(
        k4, (B2, N2), jnp.float32, minval=-np.pi / 2, maxval=np.pi / 2)
    loss2 = jax.block_until_ready(rmspe_loss(preds2, doa2, batch_tile=8))
    ref2 = _rmspe_reference(np.asarray(preds2), np.asarray(doa2))
    assert np.allclose(float(loss2), ref2, rtol=1e-4, atol=1e-4), (float(loss2), ref2)

    # Case 3: N = 5 (P = 120, padded to 256 lanes), auto tile sizing.
    B3, N3 = 13, 5
    preds3 = jax.random.uniform(
        k5, (B3, N3), jnp.float32, minval=-np.pi / 2, maxval=np.pi / 2)
    doa3 = jax.random.uniform(
        k6, (B3, N3), jnp.float32, minval=-np.pi / 2, maxval=np.pi / 2)
    loss3 = jax.block_until_ready(rmspe_loss(preds3, doa3))
    ref3 = _rmspe_reference(np.asarray(preds3), np.asarray(doa3))
    assert np.allclose(float(loss3), ref3, rtol=1e-4, atol=1e-4), (float(loss3), ref3)

    print("KERNEL_OK")
</pallas_src>

<mosaic_0001>
module attributes {stable_mosaic.version = 11 : i64} {
  func.func @_rmspe_kernel(%arg0: i32, %arg1: memref<8x6xf32, #tpu.memory_space<vmem>>, %arg2: memref<6x9xf32, #tpu.memory_space<vmem>>, %arg3: memref<9x256xf32, #tpu.memory_space<vmem>>, %arg4: memref<1x1xf32, #tpu.memory_space<vmem>>) attributes {dimension_semantics = [#tpu.dimension_semantics<arbitrary>], iteration_bounds = array<i64: 1>, scalar_prefetch = 0 : i64, scratch_operands = 0 : i64, tpu.core_type = #tpu.core_type<tc>, window_params = [{transform_indices = @transform_0, window_bounds = array<i64: 8, 6>}, {pipeline_mode = #tpu.pipeline_mode<synchronous>, transform_indices = @transform_1, window_bounds = array<i64: 6, 9>}, {pipeline_mode = #tpu.pipeline_mode<synchronous>, transform_indices = @transform_2, window_bounds = array<i64: 9, 256>}, {pipeline_mode = #tpu.pipeline_mode<synchronous>, transform_indices = @transform_3, window_bounds = array<i64: 1, 1>}]} {
    %c0_i32 = arith.constant 0 : i32
    %0 = arith.cmpi eq, %arg0, %c0_i32 : i32
    %1 = arith.extui %0 : i1 to i32
    %c0_i32_0 = arith.constant 0 : i32
    %2 = arith.cmpi ne, %1, %c0_i32_0 : i32
    scf.if %2 {
      %cst_18 = arith.constant 0.000000e+00 : f32
      %29 = vector.broadcast %cst_18 : f32 to vector<1x1xf32>
      %c0_19 = arith.constant 0 : index
      %c0_20 = arith.constant 0 : index
      %30 = vector.load %arg4[%c0_19, %c0_20] : memref<1x1xf32, #tpu.memory_space<vmem>>, vector<1x1xf32>
      tpu.vector_store %arg4[%c0_19, %c0_20], %29 {strides = array<i32>} : memref<1x1xf32, #tpu.memory_space<vmem>>, vector<1x1xf32>,
    } else {
    }
    %c0 = arith.constant 0 : index
    %c0_1 = arith.constant 0 : index
    %3 = vector.load %arg1[%c0, %c0_1] : memref<8x6xf32, #tpu.memory_space<vmem>>, vector<8x6xf32>
    %c0_2 = arith.constant 0 : index
    %c0_3 = arith.constant 0 : index
    %4 = vector.load %arg2[%c0_2, %c0_3] : memref<6x9xf32, #tpu.memory_space<vmem>>, vector<6x9xf32>
    %cst = arith.constant dense<0.000000e+00> : vector<8x9xf32>
    %5 = tpu.matmul %3, %4, %cst {dimension_numbers = #tpu.dot_dimension_numbers<[1], [0], [0], [1], [0, 0, 1, 1], [], []>} : vector<8x6xf32>, vector<6x9xf32>, vector<8x9xf32> -> vector<8x9xf32>
    %cst_4 = arith.constant 1.57079637 : f32
    %6 = vector.broadcast %cst_4 : f32 to vector<8x9xf32>
    %7 = arith.addf %5, %6 : vector<8x9xf32>
    %cst_5 = arith.constant 0.318309873 : f32
    %8 = vector.broadcast %cst_5 : f32 to vector<8x9xf32>
    %9 = arith.mulf %7, %8 : vector<8x9xf32>
    %10 = math.floor %9 : vector<8x9xf32>
    %cst_6 = arith.constant 3.14159274 : f32
    %11 = vector.broadcast %cst_6 : f32 to vector<8x9xf32>
    %12 = arith.mulf %11, %10 : vector<8x9xf32>
    %13 = arith.subf %7, %12 : vector<8x9xf32>
    %cst_7 = arith.constant 1.57079637 : f32
    %14 = vector.broadcast %cst_7 : f32 to vector<8x9xf32>
    %15 = arith.subf %13, %14 : vector<8x9xf32>
    %16 = arith.mulf %15, %15 : vector<8x9xf32>
    %c0_8 = arith.constant 0 : index
    %c0_9 = arith.constant 0 : index
    %17 = vector.load %arg3[%c0_8, %c0_9] : memref<9x256xf32, #tpu.memory_space<vmem>>, vector<9x256xf32>
    %cst_10 = arith.constant dense<0.000000e+00> : vector<8x256xf32>
    %18 = tpu.matmul %16, %17, %cst_10 {dimension_numbers = #tpu.dot_dimension_numbers<[1], [0], [0], [1], [0, 0, 1, 1], [], []>} : vector<8x9xf32>, vector<9x256xf32>, vector<8x256xf32> -> vector<8x256xf32>
    %cst_11 = arith.constant dense<0x7F800000> : vector<8xf32>
    %19 = vector.multi_reduction <minimumf>, %18, %cst_11 [1] : vector<8x256xf32> to vector<8xf32>
    %20 = vector.shape_cast %19 : vector<8xf32> to vector<8x1xf32>
    %cst_12 = arith.constant 0.333333343 : f32
    %21 = vector.broadcast %cst_12 : f32 to vector<8x1xf32>
    %22 = arith.mulf %20, %21 : vector<8x1xf32>
    %23 = math.sqrt %22 : vector<8x1xf32>
    %c0_13 = arith.constant 0 : index
    %c0_14 = arith.constant 0 : index
    %24 = vector.load %arg4[%c0_13, %c0_14] : memref<1x1xf32, #tpu.memory_space<vmem>>, vector<1x1xf32>
    %cst_15 = arith.constant dense<0.000000e+00> : vector<1xf32>
    %25 = vector.multi_reduction <add>, %23, %cst_15 [0] : vector<8x1xf32> to vector<1xf32>
    %26 = vector.shape_cast %25 : vector<1xf32> to vector<1x1xf32>
    %27 = arith.addf %24, %26 : vector<1x1xf32>
    %c0_16 = arith.constant 0 : index
    %c0_17 = arith.constant 0 : index
    %28 = vector.load %arg4[%c0_16, %c0_17] : memref<1x1xf32, #tpu.memory_space<vmem>>, vector<1x1xf32>
    tpu.vector_store %arg4[%c0_16, %c0_17], %27 {strides = array<i32>} : memref<1x1xf32, #tpu.memory_space<vmem>>, vector<1x1xf32>,
    return
  }
  func.func @transform_0(%arg0: i32) -> (i32, i32) {
    %c0_i32 = arith.constant 0 : i32
    %c0_i32_0 = arith.constant 0 : i32
    return %arg0, %c0_i32 : i32, i32
  }
  func.func @transform_1(%arg0: i32) -> (i32, i32) {
    %c0_i32 = arith.constant 0 : i32
    %c0_i32_0 = arith.constant 0 : i32
    %c0_i32_1 = arith.constant 0 : i32
    return %c0_i32, %c0_i32_0 : i32, i32
  }
  func.func @transform_2(%arg0: i32) -> (i32, i32) {
    %c0_i32 = arith.constant 0 : i32
    %c0_i32_0 = arith.constant 0 : i32
    %c0_i32_1 = arith.constant 0 : i32
    return %c0_i32, %c0_i32_0 : i32, i32
  }
  func.func @transform_3(%arg0: i32) -> (i32, i32) {
    %c0_i32 = arith.constant 0 : i32
    %c0_i32_0 = arith.constant 0 : i32
    %c0_i32_1 = arith.constant 0 : i32
    return %c0_i32, %c0_i32_0 : i32, i32
  }
}

</mosaic_0001>

<llo_original>
// kernel: tpu_custom_call.1
$region0: #{tpu_custom_call.1}
  #allocation0 [shape = 'u32[]', space=smem, size = 0x4, offset = 0x4, fixed_abs, tag = 'smem constant byte address 0x4 - core index']
  #allocation1 [shape = 'u32[144,128]{1,0:T(1,128)}', space=vmem, size = 0x12000, scoped, tag = 'internal scratch']
  %s0 = inlined_call_operand.hbm [shape: f32[8,6], index: 0, kind: input, shape index: {}]
  %s1 = inlined_call_operand.hbm [shape: f32[6,9], index: 1, kind: input, shape index: {}]
  %s2 = inlined_call_operand.hbm [shape: f32[9,256], index: 2, kind: input, shape index: {}]
  %s3 = inlined_call_operand.hbm [shape: f32[1,1], index: 3, kind: output, shape index: {}]
  %s4 = sld [smem:[#allocation0]]
  $region38: #{tpu_custom_call.1} parent=0
    _
  %s6 = ssub.s32 1, %s4
  %s7 = scalar_select 0, %s6, %s4
  $region1: #{tpu_custom_call.1} parent=0
    #allocation2 [shape = 'u8[4096]{0}', space=vmem, size = 0x1000, scoped, tag = 'input window, operand 0, single buffered']
    #allocation3 [shape = 's32[1]{0}', space=sflag, size = 0x4, scoped, tag = 'scoped memory for tpu_custom_call.1']
    #allocation4 [shape = 's32[1]{0}', space=sflag, size = 0x4, scoped, tag = 'scoped memory for tpu_custom_call.1']
    #allocation5 [shape = 'u8[4096]{0}', space=vmem, size = 0x1000, scoped, tag = 'input window, operand 1, single buffered']
    #allocation6 [shape = 's32[1]{0}', space=sflag, size = 0x4, scoped, tag = 'scoped memory for tpu_custom_call.1']
    #allocation7 [shape = 'u8[16384]{0}', space=vmem, size = 0x4000, scoped, tag = 'input window, operand 2, single buffered']
    #allocation8 [shape = 'u8[512]{0}', space=vmem, size = 0x400, scoped, tag = 'output window, operand 0, single buffered']
    %8 = vsyncpa [#allocation3], 0
    %9 = vsyncpa [#allocation6], 0
    %10 = vsyncpa [#allocation4], 0
    // Predicated region
    $region2: #{tpu_custom_call.1} parent=1 // pred_check
      _
    $region3: #{tpu_custom_call.1} parent=1 // pred_check_branch
      %12 = sbr.rel (0) target = $region5
    $region4: #{tpu_custom_call.1} parent=1 // pred_region
      %s14 = ssub.s32 128, 128
      %15 = vsyncadd [#allocation3], %s14
      %s17 = sshll.u32 [#allocation2], 4
      %s18 = int_to_ptr.vmem [resolvable:$true] %s17
      %20 = dma.hbm_to_vmem [thread:$0]  %s0, 128, %s18, [#allocation3]
    $region5: #{tpu_custom_call.1} parent=1 // pred_fallthru
      _
    // Predicated region
    $region6: #{tpu_custom_call.1} parent=1 // pred_check
      _
    $region7: #{tpu_custom_call.1} parent=1 // pred_check_branch
      %22 = sbr.rel (0) target = $region9
    $region8: #{tpu_custom_call.1} parent=1 // pred_region
      %s24 = ssub.s32 128, 128
      %25 = vsyncadd [#allocation6], %s24
      %s27 = sshll.u32 [#allocation5], 4
      %s28 = int_to_ptr.vmem [resolvable:$true] %s27
      %30 = dma.hbm_to_vmem [thread:$0]  %s1, 128, %s28, [#allocation6]
    $region9: #{tpu_custom_call.1} parent=1 // pred_fallthru
      _
    // Predicated region
    $region10: #{tpu_custom_call.1} parent=1 // pred_check
      _
    $region11: #{tpu_custom_call.1} parent=1 // pred_check_branch
      %32 = sbr.rel (0) target = $region13
    $region12: #{tpu_custom_call.1} parent=1 // pred_region
      %s34 = ssub.s32 512, 512
      %35 = vsyncadd [#allocation6], %s34
      %s36 = sshll.u32 [#allocation7], 4
      %s37 = int_to_ptr.vmem [resolvable:$true] %s36
      %42 = dma.hbm_to_vmem [thread:$0]  %s2, 512, %s37, [#allocation6], 256, 256, 16
    $region13: #{tpu_custom_call.1} parent=1 // pred_fallthru
      _
    // Predicated region
    $region14: #{tpu_custom_call.1} parent=1 // pred_check
      _
    $region15: #{tpu_custom_call.1} parent=1 // pred_check_branch
      %44 = sbr.rel (0) target = $region17
    $region16: #{tpu_custom_call.1} parent=1 // pred_region
      %45 = dma.done [#allocation3], 128
    $region17: #{tpu_custom_call.1} parent=1 // pred_fallthru
      _
    // Predicated region
    $region18: #{tpu_custom_call.1} parent=1 // pred_check
      _
    $region19: #{tpu_custom_call.1} parent=1 // pred_check_branch
      %47 = sbr.rel (0) target = $region21
    $region20: #{tpu_custom_call.1} parent=1 // pred_region
      %48 = dma.done [#allocation6], 128
    $region21: #{tpu_custom_call.1} parent=1 // pred_fallthru
      _
    // Predicated region
    $region22: #{tpu_custom_call.1} parent=1 // pred_check
      _
    $region23: #{tpu_custom_call.1} parent=1 // pred_check_branch
      %50 = sbr.rel (0) target = $region25
    $region24: #{tpu_custom_call.1} parent=1 // pred_region
      %51 = dma.done [#allocation6], 512
    $region25: #{tpu_custom_call.1} parent=1 // pred_fallthru
      _
    %p52 = scmp.eq.s32.totalorder 0, 0
    // Predicated region
    $region26: #{tpu_custom_call.1} parent=1 // pred_check
      %p53 = pneg %p52
    $region27: #{tpu_custom_call.1} parent=1 // pred_check_branch
      %55 = sbr.rel (%p53) target = $region29
    $region28: #{tpu_custom_call.1} parent=1 // pred_region
      %vm56 = vcmask 0
      %57 = vst.msk [vmem:[#allocation8] sm:$0x1] %vm56, 0.0
    $region29: #{tpu_custom_call.1} parent=1 // pred_fallthru
      _
    %v58 = vld [vmem:[#allocation2] sm:$0xff]
    %v59 = vld [vmem:[#allocation5] sm:$0x3f]
    %vm60 = vcmask 48128
    %v62 = vsel %vm60, %v58, 0
    %vm64 = vcmask 1045504
    %v66 = vsel %vm64, %v59, 0
    %68 = vmatprep.subr.mxu0 0.0
    %69 = vmatpush1.msra.mxu0 %v66
    %70 = vmatprep.subr.mxu0 0.0
    %71 = vmatpush1.msra.mxu0 0.0
    %72 = vmatprep.subr.mxu0 0.0
    %73 = vmatpush1.msra.mxu0 0.0
    %74 = vmatprep.subr.mxu0 0.0
    %75 = vmatpush1.msra.mxu0 0.0
    %76 = vmatprep.subr.mxu0 0.0
    %77 = vmatpush1.msra.mxu0 0.0
    %78 = vmatprep.subr.mxu0 0.0
    %79 = vmatpush1.msra.mxu0 0.0
    %80 = vmatprep.subr.mxu0 0.0
    %81 = vmatpush1.msra.mxu0 0.0
    %82 = vmatprep.subr.mxu0 0.0
    %83 = vmatpush1.msra.mxu0 0.0
    %84 = vmatprep.subr.mxu0 0.0
    %85 = vmatpush1.msra.mxu0 0.0
    %86 = vmatprep.subr.mxu0 0.0
    %87 = vmatpush1.msra.mxu0 0.0
    %88 = vmatprep.subr.mxu0 0.0
    %89 = vmatpush1.msra.mxu0 0.0
    %90 = vmatprep.subr.mxu0 0.0
    %91 = vmatpush1.msra.mxu0 0.0
    %92 = vmatprep.subr.mxu0 0.0
    %93 = vmatpush1.msra.mxu0 0.0
    %94 = vmatprep.subr.mxu0 0.0
    %95 = vmatpush1.msra.mxu0 0.0
    %96 = vmatprep.subr.mxu0 0.0
    %97 = vmatpush1.msra.mxu0 0.0
    %98 = vmatprep.subr.mxu0 0.0
    %99 = vmatpush1.msra.mxu0 0.0
    %100 = vmatprep.subr.mxu0 0.0
    %101 = vmatpush1.msra.mxu0 0.0
    %102 = vmatprep.subr.mxu0 0.0
    %103 = vmatpush1.msra.mxu0 0.0
    %104 = vmatprep.subr.mxu0 0.0
    %105 = vmatpush1.msra.mxu0 0.0
    %106 = vmatprep.subr.mxu0 0.0
    %107 = vmatpush1.msra.mxu0 0.0
    %108 = vmatprep.subr.mxu0 0.0
    %109 = vmatpush1.msra.mxu0 0.0
    %110 = vmatprep.subr.mxu0 0.0
    %111 = vmatpush1.msra.mxu0 0.0
    %112 = vmatprep.subr.mxu0 0.0
    %113 = vmatpush1.msra.mxu0 0.0
    %114 = vmatprep.subr.mxu0 0.0
    %115 = vmatpush1.msra.mxu0 0.0
    %116 = vmatprep.subr.mxu0 0.0
    %117 = vmatpush1.msra.mxu0 0.0
    %118 = vmatprep.subr.mxu0 0.0
    %119 = vmatpush1.msra.mxu0 0.0
    %120 = vmatprep.subr.mxu0 0.0
    %121 = vmatpush1.msra.mxu0 0.0
    %122 = vmatprep.subr.mxu0 0.0
    %123 = vmatpush1.msra.mxu0 0.0
    %124 = vmatprep.subr.mxu0 0.0
    %125 = vmatpush1.msra.mxu0 0.0
    %126 = vmatprep.subr.mxu0 0.0
    %127 = vmatpush1.msra.mxu0 0.0
    %128 = vmatprep.subr.mxu0 0.0
    %129 = vmatpush1.msra.mxu0 0.0
    %130 = vmatprep.subr.mxu0 0.0
    %131 = vmatpush1.msra.mxu0 0.0
    %132 = vmatprep.mubr.f32.mxu0 0.0
    %133 = vmatmul.mubr.f32.gmra.mrb[0].mxu0 %v62
    %v134 = vpop.f32.mrb[0].mxu0
    %v135 = vadd.f32 1.5707964, %v134
    %v136 = vpop.f32.mrb[0].mxu0
    %137 = vdwg.mxu0
    %v138 = vmul.f32 %v135, 0.31830987
    %v139 = vfloor.f32 %v138
    %v140 = vmul.f32 %v139, 3.1415927
    %v141 = vsub.f32 %v135, %v140
    %v142 = vsub.f32 %v141, 1.5707964
    %v143 = vmul.f32 %v142, %v142
    %v144 = vld [vmem:[#allocation7] sm:$0xff]
    %v145 = vld [vmem:[#allocation7 + $0x8] sm:$0xff]
    %v146 = vld [vmem:[#allocation7 + $0x10] sm:$0x1]
    %v147 = vld [vmem:[#allocation7 + $0x18] sm:$0x1]
    %vm148 = vcmask 72704
    %v150 = vsel %vm148, %v143, 0
    %vm152 = vcmask 1040384
    %v154 = vsel %vm152, %v146, 0
    %v157 = vsel %vm152, %v147, 0
    %159 = vmatprep.subr.mxu0 %v145
    %160 = vmatpush1.msra.mxu0 %v144
    %161 = vmatprep.subr.mxu0 %v157
    %162 = vmatpush1.msra.mxu0 %v154
    %163 = vmatprep.subr.mxu0 0.0
    %164 = vmatpush1.msra.mxu0 0.0
    %165 = vmatprep.subr.mxu0 0.0
    %166 = vmatpush1.msra.mxu0 0.0
    %167 = vmatprep.subr.mxu0 0.0
    %168 = vmatpush1.msra.mxu0 0.0
    %169 = vmatprep.subr.mxu0 0.0
    %170 = vmatpush1.msra.mxu0 0.0
    %171 = vmatprep.subr.mxu0 0.0
    %172 = vmatpush1.msra.mxu0 0.0
    %173 = vmatprep.subr.mxu0 0.0
    %174 = vmatpush1.msra.mxu0 0.0
    %175 = vmatprep.subr.mxu0 0.0
    %176 = vmatpush1.msra.mxu0 0.0
    %177 = vmatprep.subr.mxu0 0.0
    %178 = vmatpush1.msra.mxu0 0.0
    %179 = vmatprep.subr.mxu0 0.0
    %180 = vmatpush1.msra.mxu0 0.0
    %181 = vmatprep.subr.mxu0 0.0
    %182 = vmatpush1.msra.mxu0 0.0
    %183 = vmatprep.subr.mxu0 0.0
    %184 = vmatpush1.msra.mxu0 0.0
    %185 = vmatprep.subr.mxu0 0.0
    %186 = vmatpush1.msra.mxu0 0.0
    %187 = vmatprep.subr.mxu0 0.0
    %188 = vmatpush1.msra.mxu0 0.0
    %189 = vmatprep.subr.mxu0 0.0
    %190 = vmatpush1.msra.mxu0 0.0
    %191 = vmatprep.subr.mxu0 0.0
    %192 = vmatpush1.msra.mxu0 0.0
    %193 = vmatprep.subr.mxu0 0.0
    %194 = vmatpush1.msra.mxu0 0.0
    %195 = vmatprep.subr.mxu0 0.0
    %196 = vmatpush1.msra.mxu0 0.0
    %197 = vmatprep.subr.mxu0 0.0
    %198 = vmatpush1.msra.mxu0 0.0
    %199 = vmatprep.subr.mxu0 0.0
    %200 = vmatpush1.msra.mxu0 0.0
    %201 = vmatprep.subr.mxu0 0.0
    %202 = vmatpush1.msra.mxu0 0.0
    %203 = vmatprep.subr.mxu0 0.0
    %204 = vmatpush1.msra.mxu0 0.0
    %205 = vmatprep.subr.mxu0 0.0
    %206 = vmatpush1.msra.mxu0 0.0
    %207 = vmatprep.subr.mxu0 0.0
    %208 = vmatpush1.msra.mxu0 0.0
    %209 = vmatprep.subr.mxu0 0.0
    %210 = vmatpush1.msra.mxu0 0.0
    %211 = vmatprep.subr.mxu0 0.0
    %212 = vmatpush1.msra.mxu0 0.0
    %213 = vmatprep.subr.mxu0 0.0
    %214 = vmatpush1.msra.mxu0 0.0
    %215 = vmatprep.subr.mxu0 0.0
    %216 = vmatpush1.msra.mxu0 0.0
    %217 = vmatprep.subr.mxu0 0.0
    %218 = vmatpush1.msra.mxu0 0.0
    %219 = vmatprep.subr.mxu0 0.0
    %220 = vmatpush1.msra.mxu0 0.0
    %221 = vmatprep.subr.mxu0 0.0
    %222 = vmatpush1.msra.mxu0 0.0
    %223 = vmatprep.mubr.f32.mxu0 0.0
    %224 = vmatmul.mubr.f32.gmra.mrb[0].mxu0 %v150
    %v225 = vpop.f32.mrb[0].mxu0
    %v226 = vadd.f32 0.0, %v225
    %v227 = vpop.f32.mrb[0].mxu0
    %v228 = vadd.f32 0.0, %v227
    %229 = vdwg.mxu0
    %v230 = vmin.f32 %v226, %v228
    %231 = vmin.xlane.f32.xlu0 %v230
    %v232 = vpop.xlane.xlu0 %231
    %v233 = vmul.f32 %v232, 0.33333334
    %v234 = vrsqrt.pop %v233
    %v235 = vmul.f32 %v233, %v234
    %vm236 = vcmp.eq.f32.partialorder %v233, inf
    %v237 = vsel %vm236, %v233, %v235
    %vm238 = vcmp.eq.f32.partialorder %v233, 0.0
    %v239 = vand.u32 %v233, 2147483648
    %v240 = vsel %vm238, %v239, %v237
    %v241 = vld [vmem:[#allocation8] sm:$0x1]
    %v242 = vrot.slane %v240, 4
    %v243 = vadd.f32 %v240, %v242
    %v244 = vrot.slane %v243, 2
    %v245 = vadd.f32 %v243, %v244
    %v246 = vrot.slane %v245, 1
    %v247 = vadd.f32 %v245, %v246
    %v248 = vadd.f32 %v241, %v247
    %vm249 = vcmask 0
    %250 = vst.msk [vmem:[#allocation8] sm:$0x1] %vm249, %v248
    // Predicated region
    $region30: #{tpu_custom_call.1} parent=1 // pred_check
      _
    $region31: #{tpu_custom_call.1} parent=1 // pred_check_branch
      %252 = sbr.rel (0) target = $region33
    $region32: #{tpu_custom_call.1} parent=1 // pred_region
      %s254 = ssub.s32 16, 16
      %255 = vsyncadd [#allocation4], %s254
      %s257 = sshll.u32 [#allocation8], 4
      %s258 = int_to_ptr.vmem [resolvable:$true] %s257
      %260 = dma.vmem_to_hbm [thread:$0]  %s258, 16, %s3, [#allocation4]
    $region33: #{tpu_custom_call.1} parent=1 // pred_fallthru
      _
    // Predicated region
    $region34: #{tpu_custom_call.1} parent=1 // pred_check
      _
    $region35: #{tpu_custom_call.1} parent=1 // pred_check_branch
      %262 = sbr.rel (0) target = $region37
    $region36: #{tpu_custom_call.1} parent=1 // pred_region
      %263 = dma.done [#allocation4], 16
    $region37: #{tpu_custom_call.1} parent=1 // pred_fallthru
      _
    %264 = vsyncpa [#allocation3], 1
    %265 = vsyncpa [#allocation6], 1
    %266 = vsyncpa [#allocation4], 1

</llo_original>
